<compile_context>
chip_gen: v5e
topology: v5e:2x2
jax: 0.10.0
libtpu: 0.0.40
codegen_flags: <defaults>
</compile_context>

<pallas_src>
import jax
import jax.numpy as jnp
from jax.experimental import pallas as pl
from jax.experimental.pallas import tpu as pltpu

_BN_EPS = 1e-5
_TILE_N_MAX = 1024  # rows per grid step (multiple of 8/16; 512-2048 sweet spot)


def _mlp_kernel(x_ref, w1_ref, b1_ref, w2_ref, b2_ref, w3_ref, b3_ref, o_ref):
    """Fused MLP tile: Linear->ReLU->Linear->ReLU->Linear->sigmoid.

    BatchNorm (eval) affines are pre-folded into w2/b2 and w3/b3.
    Dropout is identity (inference).
    """
    x = x_ref[...].astype(jnp.float32)  # bf16-streamed inputs are up-cast in VMEM

    h1 = jnp.dot(x, w1_ref[...], preferred_element_type=jnp.float32) + b1_ref[...]
    h1 = jnp.maximum(h1, 0.0)

    h2 = jnp.dot(h1, w2_ref[...], preferred_element_type=jnp.float32) + b2_ref[...]
    h2 = jnp.maximum(h2, 0.0)

    logits = jnp.dot(h2, w3_ref[...], preferred_element_type=jnp.float32) + b3_ref[...]
    # sigmoid = 1 / (1 + exp(-z)): exp on the EUP, reciprocal instead of a VALU divide.
    o_ref[...] = pl.reciprocal(1.0 + jnp.exp(-logits)).astype(o_ref.dtype)


def binary_classification_forward(x, folded_params, *, tile_n=_TILE_N_MAX):
    """x: (N, F) f32 or bf16. folded_params: (w1, b1, w2f, b2f, w3f, b3f) f32."""
    w1, b1, w2f, b2f, w3f, b3f = folded_params
    n, f = x.shape
    c = w3f.shape[1]
    tile_n = min(tile_n, n)
    grid = (pl.cdiv(n, tile_n),)

    const = lambda i: (0, 0)
    in_specs = [
        pl.BlockSpec((tile_n, f), lambda i: (i, 0)),  # x: streamed + double-buffered
        pl.BlockSpec((f, 128), const),                # weights: VMEM-resident
        pl.BlockSpec((1, 128), const),
        pl.BlockSpec((128, 64), const),
        pl.BlockSpec((1, 64), const),
        pl.BlockSpec((64, c), const),
        pl.BlockSpec((1, c), const),
    ]
    out_specs = pl.BlockSpec((tile_n, c), lambda i: (i, 0))

    itemsize = jnp.dtype(x.dtype).itemsize
    weight_bytes = sum(int(p.size) * 4 for p in folded_params)
    cost = pl.CostEstimate(
        flops=int(2 * n * (f * 128 + 128 * 64 + 64 * c)),
        transcendentals=int(n * c),
        bytes_accessed=int(n * f * itemsize + n * c * 4 + weight_bytes),
    )

    return pl.pallas_call(
        _mlp_kernel,
        out_shape=jax.ShapeDtypeStruct((n, c), jnp.float32),
        grid=grid,
        in_specs=in_specs,
        out_specs=out_specs,
        compiler_params=pltpu.CompilerParams(
            dimension_semantics=("parallel",),      # v7x: shard batch over 2 TCs
            vmem_limit_bytes=32 * 1024 * 1024,      # safe on v5e/v6e/v7x; ample headroom
        ),
        cost_estimate=cost,
    )(x, w1, b1, w2f, b2f, w3f, b3f)


def init_raw_params(key, num_feature, num_class):
    """Mirror nn.Linear default init + synthetic eval-mode BatchNorm statistics."""
    ks = jax.random.split(key, 14)

    def linear(kw, kb, fan_in, fan_out):
        bound = float(fan_in) ** -0.5
        w = jax.random.uniform(kw, (fan_in, fan_out), jnp.float32, -bound, bound)
        b = jax.random.uniform(kb, (1, fan_out), jnp.float32, -bound, bound)
        return w, b

    def bn(kg, kb, km, kv, dim):
        gamma = 1.0 + 0.1 * jax.random.normal(kg, (1, dim), jnp.float32)
        beta = 0.1 * jax.random.normal(kb, (1, dim), jnp.float32)
        mean = 0.1 * jax.random.normal(km, (1, dim), jnp.float32)
        var = 1.0 + 0.1 * jax.random.uniform(kv, (1, dim), jnp.float32)
        return gamma, beta, mean, var

    w1, b1 = linear(ks[0], ks[1], num_feature, 128)
    w2, b2 = linear(ks[2], ks[3], 128, 64)
    w3, b3 = linear(ks[4], ks[5], 64, num_class)
    bn1 = bn(ks[6], ks[7], ks[8], ks[9], 128)
    bn2 = bn(ks[10], ks[11], ks[12], ks[13], 64)
    return dict(w1=w1, b1=b1, w2=w2, b2=b2, w3=w3, b3=b3, bn1=bn1, bn2=bn2)


def fold_params(raw):
    """Fold eval-mode BatchNorm affines into the following Linear layer.

    a = h*s + t  followed by  a @ W + b   ==   h @ (diag(s) @ W) + (t @ W + b)
    """
    hp = jax.lax.Precision.HIGHEST
    g1, be1, m1, v1 = raw["bn1"]
    s1 = g1 / jnp.sqrt(v1 + _BN_EPS)
    t1 = be1 - m1 * s1
    g2, be2, m2, v2 = raw["bn2"]
    s2 = g2 / jnp.sqrt(v2 + _BN_EPS)
    t2 = be2 - m2 * s2

    w2f = raw["w2"] * s1.reshape(-1, 1)
    b2f = jnp.dot(t1, raw["w2"], precision=hp) + raw["b2"]
    w3f = raw["w3"] * s2.reshape(-1, 1)
    b3f = jnp.dot(t2, raw["w3"], precision=hp) + raw["b3"]
    return (raw["w1"], raw["b1"], w2f, b2f, w3f, b3f)


def reference_forward(x, raw):
    """Pure-JAX mirror of the PyTorch module in eval mode (unfolded BN)."""
    g1, be1, m1, v1 = raw["bn1"]
    g2, be2, m2, v2 = raw["bn2"]
    h = jnp.maximum(x @ raw["w1"] + raw["b1"], 0.0)
    h = (h - m1) / jnp.sqrt(v1 + _BN_EPS) * g1 + be1
    h = jnp.maximum(h @ raw["w2"] + raw["b2"], 0.0)
    h = (h - m2) / jnp.sqrt(v2 + _BN_EPS) * g2 + be2
    # dropout: identity in eval mode
    return jax.nn.sigmoid(h @ raw["w3"] + raw["b3"])


if __name__ == "__main__":
    num_feature = 32
    num_class = 1
    batch = 8

    key = jax.random.PRNGKey(0)
    k_x, k_p = jax.random.split(key)
    x = jax.random.normal(k_x, (batch, num_feature), jnp.float32)
    raw = init_raw_params(k_p, num_feature, num_class)
    params = fold_params(raw)

    # f32 input path (tolerance covers bf16-pass default matmul precision and
    # the folded-vs-unfolded rounding-pattern difference).
    out = jax.block_until_ready(binary_classification_forward(x, params))
    ref = reference_forward(x, raw)
    assert out.shape == (batch, num_class)
    assert bool(jnp.all(jnp.isfinite(out)))
    assert jnp.allclose(out, ref, atol=2e-3, rtol=2e-3), float(jnp.max(jnp.abs(out - ref)))

    # bf16-streamed input path: halves the HBM traffic of x at large batch.
    x_bf16 = x.astype(jnp.bfloat16)
    out_bf = jax.block_until_ready(binary_classification_forward(x_bf16, params))
    ref_bf = reference_forward(x_bf16.astype(jnp.float32), raw)
    assert out_bf.shape == (batch, num_class)
    assert jnp.allclose(out_bf, ref_bf, atol=2e-3, rtol=2e-3)

    print("KERNEL_OK")
</pallas_src>

<mosaic_0001>
module attributes {stable_mosaic.version = 11 : i64} {
  func.func @_mlp_kernel(%arg0: i32, %arg1: memref<8x32xf32, #tpu.memory_space<vmem>>, %arg2: memref<32x128xf32, #tpu.memory_space<vmem>>, %arg3: memref<1x128xf32, #tpu.memory_space<vmem>>, %arg4: memref<128x64xf32, #tpu.memory_space<vmem>>, %arg5: memref<1x64xf32, #tpu.memory_space<vmem>>, %arg6: memref<64x1xf32, #tpu.memory_space<vmem>>, %arg7: memref<1x1xf32, #tpu.memory_space<vmem>>, %arg8: memref<8x1xf32, #tpu.memory_space<vmem>>) attributes {dimension_semantics = [#tpu.dimension_semantics<parallel>], iteration_bounds = array<i64: 1>, scalar_prefetch = 0 : i64, scratch_operands = 0 : i64, tpu.core_type = #tpu.core_type<tc>, window_params = [{transform_indices = @transform_0, window_bounds = array<i64: 8, 32>}, {pipeline_mode = #tpu.pipeline_mode<synchronous>, transform_indices = @transform_1, window_bounds = array<i64: 32, 128>}, {pipeline_mode = #tpu.pipeline_mode<synchronous>, transform_indices = @transform_2, window_bounds = array<i64: 1, 128>}, {pipeline_mode = #tpu.pipeline_mode<synchronous>, transform_indices = @transform_3, window_bounds = array<i64: 128, 64>}, {pipeline_mode = #tpu.pipeline_mode<synchronous>, transform_indices = @transform_4, window_bounds = array<i64: 1, 64>}, {pipeline_mode = #tpu.pipeline_mode<synchronous>, transform_indices = @transform_5, window_bounds = array<i64: 64, 1>}, {pipeline_mode = #tpu.pipeline_mode<synchronous>, transform_indices = @transform_6, window_bounds = array<i64: 1, 1>}, {transform_indices = @transform_7, window_bounds = array<i64: 8, 1>}]} {
    %c0 = arith.constant 0 : index
    %c0_0 = arith.constant 0 : index
    %0 = vector.load %arg1[%c0, %c0_0] : memref<8x32xf32, #tpu.memory_space<vmem>>, vector<8x32xf32>
    %c0_1 = arith.constant 0 : index
    %c0_2 = arith.constant 0 : index
    %1 = vector.load %arg2[%c0_1, %c0_2] : memref<32x128xf32, #tpu.memory_space<vmem>>, vector<32x128xf32>
    %cst = arith.constant dense<0.000000e+00> : vector<8x128xf32>
    %2 = tpu.matmul %0, %1, %cst {dimension_numbers = #tpu.dot_dimension_numbers<[1], [0], [0], [1], [0, 0, 1, 1], [], []>} : vector<8x32xf32>, vector<32x128xf32>, vector<8x128xf32> -> vector<8x128xf32>
    %c0_3 = arith.constant 0 : index
    %c0_4 = arith.constant 0 : index
    %3 = vector.load %arg3[%c0_3, %c0_4] : memref<1x128xf32, #tpu.memory_space<vmem>>, vector<1x128xf32>
    %4 = vector.broadcast %3 : vector<1x128xf32> to vector<8x128xf32>
    %5 = arith.addf %2, %4 : vector<8x128xf32>
    %cst_5 = arith.constant 0.000000e+00 : f32
    %6 = vector.broadcast %cst_5 : f32 to vector<8x128xf32>
    %7 = arith.maximumf %5, %6 : vector<8x128xf32>
    %c0_6 = arith.constant 0 : index
    %c0_7 = arith.constant 0 : index
    %8 = vector.load %arg4[%c0_6, %c0_7] : memref<128x64xf32, #tpu.memory_space<vmem>>, vector<128x64xf32>
    %cst_8 = arith.constant dense<0.000000e+00> : vector<8x64xf32>
    %9 = tpu.matmul %7, %8, %cst_8 {dimension_numbers = #tpu.dot_dimension_numbers<[1], [0], [0], [1], [0, 0, 1, 1], [], []>} : vector<8x128xf32>, vector<128x64xf32>, vector<8x64xf32> -> vector<8x64xf32>
    %c0_9 = arith.constant 0 : index
    %c0_10 = arith.constant 0 : index
    %10 = vector.load %arg5[%c0_9, %c0_10] : memref<1x64xf32, #tpu.memory_space<vmem>>, vector<1x64xf32>
    %11 = vector.broadcast %10 : vector<1x64xf32> to vector<8x64xf32>
    %12 = arith.addf %9, %11 : vector<8x64xf32>
    %cst_11 = arith.constant 0.000000e+00 : f32
    %13 = vector.broadcast %cst_11 : f32 to vector<8x64xf32>
    %14 = arith.maximumf %12, %13 : vector<8x64xf32>
    %c0_12 = arith.constant 0 : index
    %c0_13 = arith.constant 0 : index
    %15 = vector.load %arg6[%c0_12, %c0_13] : memref<64x1xf32, #tpu.memory_space<vmem>>, vector<64x1xf32>
    %cst_14 = arith.constant dense<0.000000e+00> : vector<8x1xf32>
    %16 = tpu.matmul %14, %15, %cst_14 {dimension_numbers = #tpu.dot_dimension_numbers<[1], [0], [0], [1], [0, 0, 1, 1], [], []>} : vector<8x64xf32>, vector<64x1xf32>, vector<8x1xf32> -> vector<8x1xf32>
    %c0_15 = arith.constant 0 : index
    %c0_16 = arith.constant 0 : index
    %17 = vector.load %arg7[%c0_15, %c0_16] : memref<1x1xf32, #tpu.memory_space<vmem>>, vector<1x1xf32>
    %18 = vector.broadcast %17 : vector<1x1xf32> to vector<8x1xf32>
    %19 = arith.addf %16, %18 : vector<8x1xf32>
    %cst_17 = arith.constant 0.000000e+00 : f32
    %20 = vector.broadcast %cst_17 : f32 to vector<8x1xf32>
    %21 = arith.subf %20, %19 : vector<8x1xf32>
    %22 = math.exp %21 : vector<8x1xf32>
    %cst_18 = arith.constant 1.000000e+00 : f32
    %23 = vector.broadcast %cst_18 : f32 to vector<8x1xf32>
    %24 = arith.addf %23, %22 : vector<8x1xf32>
    %25 = tpu.reciprocal %24 : vector<8x1xf32> -> vector<8x1xf32>
    %c0_19 = arith.constant 0 : index
    %c0_20 = arith.constant 0 : index
    %26 = vector.load %arg8[%c0_19, %c0_20] : memref<8x1xf32, #tpu.memory_space<vmem>>, vector<8x1xf32>
    tpu.vector_store %arg8[%c0_19, %c0_20], %25 {strides = array<i32>} : memref<8x1xf32, #tpu.memory_space<vmem>>, vector<8x1xf32>,
    return
  }
  func.func @transform_0(%arg0: i32) -> (i32, i32) {
    %c0_i32 = arith.constant 0 : i32
    %c0_i32_0 = arith.constant 0 : i32
    return %arg0, %c0_i32 : i32, i32
  }
  func.func @transform_1(%arg0: i32) -> (i32, i32) {
    %c0_i32 = arith.constant 0 : i32
    %c0_i32_0 = arith.constant 0 : i32
    %c0_i32_1 = arith.constant 0 : i32
    return %c0_i32, %c0_i32_0 : i32, i32
  }
  func.func @transform_2(%arg0: i32) -> (i32, i32) {
    %c0_i32 = arith.constant 0 : i32
    %c0_i32_0 = arith.constant 0 : i32
    %c0_i32_1 = arith.constant 0 : i32
    return %c0_i32, %c0_i32_0 : i32, i32
  }
  func.func @transform_3(%arg0: i32) -> (i32, i32) {
    %c0_i32 = arith.constant 0 : i32
    %c0_i32_0 = arith.constant 0 : i32
    %c0_i32_1 = arith.constant 0 : i32
    return %c0_i32, %c0_i32_0 : i32, i32
  }
  func.func @transform_4(%arg0: i32) -> (i32, i32) {
    %c0_i32 = arith.constant 0 : i32
    %c0_i32_0 = arith.constant 0 : i32
    %c0_i32_1 = arith.constant 0 : i32
    return %c0_i32, %c0_i32_0 : i32, i32
  }
  func.func @transform_5(%arg0: i32) -> (i32, i32) {
    %c0_i32 = arith.constant 0 : i32
    %c0_i32_0 = arith.constant 0 : i32
    %c0_i32_1 = arith.constant 0 : i32
    return %c0_i32, %c0_i32_0 : i32, i32
  }
  func.func @transform_6(%arg0: i32) -> (i32, i32) {
    %c0_i32 = arith.constant 0 : i32
    %c0_i32_0 = arith.constant 0 : i32
    %c0_i32_1 = arith.constant 0 : i32
    return %c0_i32, %c0_i32_0 : i32, i32
  }
  func.func @transform_7(%arg0: i32) -> (i32, i32) {
    %c0_i32 = arith.constant 0 : i32
    %c0_i32_0 = arith.constant 0 : i32
    return %arg0, %c0_i32 : i32, i32
  }
}

</mosaic_0001>

<llo_original>
// kernel: tpu_custom_call.1
$region0: #{tpu_custom_call.1}
  #allocation0 [shape = 'u32[]', space=smem, size = 0x4, offset = 0x4, fixed_abs, tag = 'smem constant byte address 0x4 - core index']
  #allocation1 [shape = 'u32[72,128]{1,0:T(1,128)}', space=vmem, size = 0x9000, scoped, tag = 'internal scratch']
  #allocation2 [shape = 'f32[1,1]{1,0:T(1,128)S(1)}', space=vmem, size = 0x200, scoped, tag = 'scoped memory for tpu_custom_call.1']
  %s0 = inlined_call_operand.vmem [shape: f32[8,32], index: 0, kind: input, shape index: {}]
  %s1 = inlined_call_operand.vmem [shape: f32[32,128], index: 1, kind: input, shape index: {}]
  %s2 = inlined_call_operand.vmem [shape: f32[1,128], index: 2, kind: input, shape index: {}]
  %s3 = inlined_call_operand.vmem [shape: f32[128,64], index: 3, kind: input, shape index: {}]
  %s4 = inlined_call_operand.vmem [shape: f32[1,64], index: 4, kind: input, shape index: {}]
  %s5 = inlined_call_operand.vmem [shape: f32[64,1], index: 5, kind: input, shape index: {}]
  %s6 = inlined_call_operand.<no memory space> [shape: f32[1,1], index: 6, kind: input, shape index: {}]
  %s7 = inlined_call_operand.vmem [shape: f32[8,1], index: 7, kind: output, shape index: {}]
  %s8 = sld [smem:[#allocation0]]
  $region38: #{tpu_custom_call.1} parent=0
    _
  %s10 = ssub.s32 1, %s8
  %s11 = scalar_select 0, %s10, %s8
  %v12 = vstv %s6
  %13 = vst [vmem:[#allocation2] sm:$0x1] %v12
  // Predicated region
  $region2: #{tpu_custom_call.1} parent=0 // pred_check
    _
  $region3: #{tpu_custom_call.1} parent=0 // pred_check_branch
    %15 = sbr.rel (0) target = $region5
  $region4: #{tpu_custom_call.1} parent=0 // pred_region
    _
  $region5: #{tpu_custom_call.1} parent=0 // pred_fallthru
    _
  // Predicated region
  $region6: #{tpu_custom_call.1} parent=0 // pred_check
    _
  $region7: #{tpu_custom_call.1} parent=0 // pred_check_branch
    %17 = sbr.rel (0) target = $region9
  $region8: #{tpu_custom_call.1} parent=0 // pred_region
    _
  $region9: #{tpu_custom_call.1} parent=0 // pred_fallthru
    _
  // Predicated region
  $region10: #{tpu_custom_call.1} parent=0 // pred_check
    _
  $region11: #{tpu_custom_call.1} parent=0 // pred_check_branch
    %19 = sbr.rel (0) target = $region13
  $region12: #{tpu_custom_call.1} parent=0 // pred_region
    _
  $region13: #{tpu_custom_call.1} parent=0 // pred_fallthru
    _
  // Predicated region
  $region14: #{tpu_custom_call.1} parent=0 // pred_check
    _
  $region15: #{tpu_custom_call.1} parent=0 // pred_check_branch
    %21 = sbr.rel (0) target = $region17
  $region16: #{tpu_custom_call.1} parent=0 // pred_region
    _
  $region17: #{tpu_custom_call.1} parent=0 // pred_fallthru
    _
  // Predicated region
  $region18: #{tpu_custom_call.1} parent=0 // pred_check
    _
  $region19: #{tpu_custom_call.1} parent=0 // pred_check_branch
    %23 = sbr.rel (0) target = $region21
  $region20: #{tpu_custom_call.1} parent=0 // pred_region
    _
  $region21: #{tpu_custom_call.1} parent=0 // pred_fallthru
    _
  // Predicated region
  $region22: #{tpu_custom_call.1} parent=0 // pred_check
    _
  $region23: #{tpu_custom_call.1} parent=0 // pred_check_branch
    %25 = sbr.rel (0) target = $region25
  $region24: #{tpu_custom_call.1} parent=0 // pred_region
    _
  $region25: #{tpu_custom_call.1} parent=0 // pred_fallthru
    _
  // Predicated region
  $region26: #{tpu_custom_call.1} parent=0 // pred_check
    _
  $region27: #{tpu_custom_call.1} parent=0 // pred_check_branch
    %27 = sbr.rel (0) target = $region29
  $region28: #{tpu_custom_call.1} parent=0 // pred_region
    _
  $region29: #{tpu_custom_call.1} parent=0 // pred_fallthru
    _
  %v28 = vld [vmem:[%s0] sm:$0xff]
  %v29 = vld [vmem:[%s1] sm:$0xff]
  %v30 = vld [vmem:[%s1 + $0x8] sm:$0xff]
  %v31 = vld [vmem:[%s1 + $0x10] sm:$0xff]
  %v32 = vld [vmem:[%s1 + $0x18] sm:$0xff]
  %v33 = vld [vmem:[%s2] sm:$0x1]
  %v35 = vperm.slane %v33, 0
  %vm37 = vcmask 261120
  %v39 = vsel %vm37, %v28, 0
  %41 = vmatpush.msra.mxu0 0.0
  %42 = vmatpush.msra.mxu0 0.0
  %43 = vmatpush.msra.mxu0 0.0
  %44 = vmatpush.msra.mxu0 0.0
  %45 = vmatpush.msra.mxu0 0.0
  %46 = vmatpush.msra.mxu0 0.0
  %47 = vmatpush.msra.mxu0 0.0
  %48 = vmatpush.msra.mxu0 0.0
  %49 = vmatpush.msra.mxu0 0.0
  %50 = vmatpush.msra.mxu0 0.0
  %51 = vmatpush.msra.mxu0 0.0
  %52 = vmatpush.msra.mxu0 0.0
  %53 = vmatpush.msra.mxu0 %v32
  %54 = vmatpush.msra.mxu0 %v31
  %55 = vmatpush.msra.mxu0 %v30
  %56 = vmatpush.msra.mxu0 %v29
  %57 = vmatmul.f32.gmra.mxu0 %v39
  %v58 = vpop.f32.mrf.mxu0
  %v59 = vadd.f32 %v35, %v58
  %60 = vdwg.mxu0
  %v61 = vmax.f32 %v59, 0.0
  %v62 = vld [vmem:[%s3] sm:$0xff]
  %v63 = vld [vmem:[%s3 + $0x8] sm:$0xff]
  %v64 = vld [vmem:[%s3 + $0x10] sm:$0xff]
  %v65 = vld [vmem:[%s3 + $0x18] sm:$0xff]
  %v66 = vld [vmem:[%s3 + $0x20] sm:$0xff]
  %v67 = vld [vmem:[%s3 + $0x28] sm:$0xff]
  %v68 = vld [vmem:[%s3 + $0x30] sm:$0xff]
  %v69 = vld [vmem:[%s3 + $0x38] sm:$0xff]
  %v70 = vld [vmem:[%s3 + $0x40] sm:$0xff]
  %v71 = vld [vmem:[%s3 + $0x48] sm:$0xff]
  %v72 = vld [vmem:[%s3 + $0x50] sm:$0xff]
  %v73 = vld [vmem:[%s3 + $0x58] sm:$0xff]
  %v74 = vld [vmem:[%s3 + $0x60] sm:$0xff]
  %v75 = vld [vmem:[%s3 + $0x68] sm:$0xff]
  %v76 = vld [vmem:[%s3 + $0x70] sm:$0xff]
  %v77 = vld [vmem:[%s3 + $0x78] sm:$0xff]
  %v78 = vld [vmem:[%s4] sm:$0x1]
  %v80 = vperm.slane %v78, 0
  %82 = vmatpush.msra.mxu0 %v77
  %83 = vmatpush.msra.mxu0 %v76
  %84 = vmatpush.msra.mxu0 %v75
  %85 = vmatpush.msra.mxu0 %v74
  %86 = vmatpush.msra.mxu0 %v73
  %87 = vmatpush.msra.mxu0 %v72
  %88 = vmatpush.msra.mxu0 %v71
  %89 = vmatpush.msra.mxu0 %v70
  %90 = vmatpush.msra.mxu0 %v69
  %91 = vmatpush.msra.mxu0 %v68
  %92 = vmatpush.msra.mxu0 %v67
  %93 = vmatpush.msra.mxu0 %v66
  %94 = vmatpush.msra.mxu0 %v65
  %95 = vmatpush.msra.mxu0 %v64
  %96 = vmatpush.msra.mxu0 %v63
  %97 = vmatpush.msra.mxu0 %v62
  %98 = vmatmul.f32.gmra.mxu0 %v61
  %v99 = vpop.f32.mrf.mxu0
  %v100 = vadd.f32 %v80, %v99
  %101 = vdwg.mxu0
  %v102 = vmax.f32 %v100, 0.0
  %v103 = vld [vmem:[%s5] sm:$0xff]
  %v104 = vld [vmem:[%s5 + $0x8] sm:$0xff]
  %v105 = vld [vmem:[%s5 + $0x10] sm:$0xff]
  %v106 = vld [vmem:[%s5 + $0x18] sm:$0xff]
  %v107 = vld [vmem:[%s5 + $0x20] sm:$0xff]
  %v108 = vld [vmem:[%s5 + $0x28] sm:$0xff]
  %v109 = vld [vmem:[%s5 + $0x30] sm:$0xff]
  %v110 = vld [vmem:[%s5 + $0x38] sm:$0xff]
  %v111 = vld [vmem:[#allocation2] sm:$0x1]
  %v113 = vperm.slane %v111, 0
  %vm115 = vcmask 523264
  %v117 = vsel %vm115, %v102, 0
  %119 = vmatpush.msra.mxu0 0.0
  %120 = vmatpush.msra.mxu0 0.0
  %121 = vmatpush.msra.mxu0 0.0
  %122 = vmatpush.msra.mxu0 0.0
  %123 = vmatpush.msra.mxu0 0.0
  %124 = vmatpush.msra.mxu0 0.0
  %125 = vmatpush.msra.mxu0 0.0
  %126 = vmatpush.msra.mxu0 0.0
  %127 = vmatpush.msra.mxu0 %v110
  %128 = vmatpush.msra.mxu0 %v109
  %129 = vmatpush.msra.mxu0 %v108
  %130 = vmatpush.msra.mxu0 %v107
  %131 = vmatpush.msra.mxu0 %v106
  %132 = vmatpush.msra.mxu0 %v105
  %133 = vmatpush.msra.mxu0 %v104
  %134 = vmatpush.msra.mxu0 %v103
  %135 = vmatmul.f32.gmra.mxu0 %v117
  %v136 = vpop.f32.mrf.mxu0
  %v137 = vadd.f32 %v113, %v136
  %138 = vdwg.mxu0
  %v139 = vsub.f32 0.0, %v137
  %v140 = vmul.f32 %v139, 1.442695
  %v141 = vpow.pop %v140
  %v142 = vadd.f32 %v141, 1.0
  %v143 = vrcp.pop %v142
  %v144 = vmul.f32 %v142, %v143
  %v145 = vsub.f32 1.0, %v144
  %v146 = vmul.f32 %v143, %v145
  %v147 = vadd.f32 %v143, %v146
  %vm148 = vweird.f32 %v142
  %vm149 = vweird.f32 %v143
  %vm150 = vmor %vm148, %vm149
  %v151 = vsel %vm150, %v143, %v147
  %v152 = vand.u32 2147483647, %v142
  %vm153 = vcmp.eq.f32.partialorder %v152, 8.507059e+37
  %v154 = vand.u32 %v142, 2147483648
  %v155 = vor.u32 1.1754944e-38, %v154
  %v156 = vsel %vm153, %v155, %v151
  %vm157 = vcmask 7168
  %158 = vst.msk [vmem:[%s7] sm:$0xff] %vm157, %v156
  // Predicated region
  $region30: #{tpu_custom_call.1} parent=0 // pred_check
    _
  $region31: #{tpu_custom_call.1} parent=0 // pred_check_branch
    %160 = sbr.rel (0) target = $region33
  $region32: #{tpu_custom_call.1} parent=0 // pred_region
    _
  $region33: #{tpu_custom_call.1} parent=0 // pred_fallthru
    _
  // Predicated region
  $region34: #{tpu_custom_call.1} parent=0 // pred_check
    _
  $region35: #{tpu_custom_call.1} parent=0 // pred_check_branch
    %162 = sbr.rel (0) target = $region37
  $region36: #{tpu_custom_call.1} parent=0 // pred_region
    _
  $region37: #{tpu_custom_call.1} parent=0 // pred_fallthru
    _

</llo_original>
